<compile_context>
chip_gen: v6e
topology: v6e:2x2x1
jax: 0.10.0
libtpu: 0.0.40
codegen_flags: <defaults>
</compile_context>

<pallas_src>
import functools
from typing import NamedTuple, Tuple

import jax
import jax.numpy as jnp
from jax.experimental import pallas as pl
from jax.experimental.pallas import tpu as pltpu


LANE = 128      # lane-dense padding target (vreg lane width / v5e MXU tile); do NOT raise to 256
SUBLANE = 8     # sublane alignment for slab row offsets


def _round_up(n, m):
    return ((n + m - 1) // m) * m


class MLPParams(NamedTuple):
    w_slab: jax.Array                       # (slab_rows, slab_width), compute dtype (bf16 default)
    b_slab: jax.Array                       # (num_layers, slab_width), f32
    layer_meta: Tuple[Tuple[int, int, int], ...]  # per layer: (row_off, in_pad, out_pad) -- static
    logical_out_dim: int
    out_pad: int


def _make_mlp_kernel(layer_meta):
    """Fused MLP kernel: all layers computed from a single packed weight slab."""
    num_layers = len(layer_meta)

    def kernel(x_ref, w_ref, b_ref, o_ref):
        h = x_ref[...]                                   # (bm, in_dim), f32
        for i, (row_off, in_pad, out_pad) in enumerate(layer_meta):
            w = w_ref[row_off:row_off + in_pad, :out_pad]   # static slice, (in_pad, out_pad)
            b = b_ref[i:i + 1, :out_pad]                    # (1, out_pad), f32
            hin = h if h.dtype == w.dtype else h.astype(w.dtype)
            h = jnp.dot(hin, w, preferred_element_type=jnp.float32) + b
            if i < num_layers - 1:
                h = jnp.maximum(h, 0.0)                     # ReLU on all but last layer (f32 VPU)
        o_ref[...] = h.astype(o_ref.dtype)

    return kernel


def prepare_params(params, compute_dtype=jnp.bfloat16):
    """One-time param packing (keep OUT of the per-step hot path).

    params: list of (W, b) in PyTorch convention: W (out, in), b (out,).
    Returns MLPParams with a single lane-dense weight slab (compute_dtype) and a
    bias slab (f32), plus static per-layer slicing metadata.
    """
    num_layers = len(params)

    dims = []
    prev_out_pad = None
    for idx, (w, _) in enumerate(params):
        out_dim, in_dim = w.shape
        in_pad = in_dim if idx == 0 else prev_out_pad
        out_pad = _round_up(out_dim, LANE)
        dims.append((in_dim, out_dim, in_pad, out_pad))
        prev_out_pad = out_pad

    slab_width = max(d[3] for d in dims)
    row_offs, rows = [], 0
    for (_, _, in_pad, _) in dims:
        row_offs.append(rows)
        rows += _round_up(in_pad, SUBLANE)

    w_slab = jnp.zeros((rows, slab_width), jnp.float32)
    b_slab = jnp.zeros((num_layers, slab_width), jnp.float32)
    layer_meta = []
    for idx, ((w, b), (in_dim, out_dim, in_pad, out_pad), off) in enumerate(
            zip(params, dims, row_offs)):
        w = jnp.asarray(w, jnp.float32)
        b = jnp.asarray(b, jnp.float32)
        w_slab = w_slab.at[off:off + in_dim, :out_dim].set(w.T)
        b_slab = b_slab.at[idx, :out_dim].set(b)
        layer_meta.append((off, in_pad, out_pad))

    return MLPParams(
        w_slab=w_slab.astype(compute_dtype),
        b_slab=b_slab,                              # biases stay f32
        layer_meta=tuple(layer_meta),
        logical_out_dim=dims[-1][1],
        out_pad=dims[-1][3],
    )


@functools.partial(
    jax.jit,
    static_argnames=("layer_meta", "logical_out_dim", "out_pad",
                     "small_batch_threshold", "block_batch"))
def _mlp_forward(x, w_slab, b_slab, *, layer_meta, logical_out_dim, out_pad,
                 small_batch_threshold=256, block_batch=2048):
    batch, in_dim = x.shape
    kernel = _make_mlp_kernel(layer_meta)
    # bf16 padded output slab halves HBM writeback; wrapper slices + casts back.
    out_dtype = jnp.bfloat16 if w_slab.dtype == jnp.bfloat16 else jnp.float32
    out_shape = jax.ShapeDtypeStruct((batch, out_pad), out_dtype)

    if batch <= small_batch_threshold:
        # Small-batch (RL) path: single invocation, no grid, fully VMEM-resident,
        # one contiguous DMA per slab (x + weight slab + bias slab).
        vmem = pltpu.MemorySpace.VMEM
        out_padded = pl.pallas_call(
            kernel,
            out_shape=out_shape,
            in_specs=[pl.BlockSpec(memory_space=vmem)] * 3,
            out_specs=pl.BlockSpec(memory_space=vmem),
        )(x, w_slab, b_slab)
    else:
        # Batch-tiled path: big tiles (per-grid-step overhead dominates), but keep
        # >= 2 grid steps so "parallel" can shard across v7x's two TensorCores.
        # bm multiple of 16 -> clean bf16 sublane packing (and of 8 for f32).
        bm = min(block_batch, max(16, _round_up(pl.cdiv(batch, 2), 16)))
        grid = (pl.cdiv(batch, bm),)
        # NOTE: weight/bias slabs are grid-invariant; if this MLP is ever scaled
        # up, single-buffer them (pipeline_mode=pl.Buffered(1)) to save VMEM.
        in_specs = [
            pl.BlockSpec((bm, in_dim), lambda i: (i, 0)),
            pl.BlockSpec(w_slab.shape, lambda i: (0, 0)),
            pl.BlockSpec(b_slab.shape, lambda i: (0, 0)),
        ]
        out_specs = pl.BlockSpec((bm, out_pad), lambda i: (i, 0))
        out_padded = pl.pallas_call(
            kernel,
            out_shape=out_shape,
            grid=grid,
            in_specs=in_specs,
            out_specs=out_specs,
            compiler_params=pltpu.CompilerParams(
                dimension_semantics=("parallel",),
            ),
        )(x, w_slab, b_slab)

    # Fused (under jit) slice back to the logical output width, f32 interface.
    return out_padded[:, :logical_out_dim].astype(jnp.float32)


def mlp_forward(x, prep: MLPParams, **kwargs):
    """Jitted fused MLP forward.  x: (batch, sizes[0]) f32 -> (batch, sizes[-1]) f32."""
    return _mlp_forward(x, prep.w_slab, prep.b_slab,
                        layer_meta=prep.layer_meta,
                        logical_out_dim=prep.logical_out_dim,
                        out_pad=prep.out_pad,
                        **kwargs)


def init_mlp_params(key, sizes):
    """Deterministic init mimicking PyTorch nn.Linear default:
    U(-1/sqrt(fan_in), 1/sqrt(fan_in)) for both weight and bias."""
    params = []
    for in_size, out_size in zip(sizes[:-1], sizes[1:]):
        key, kw, kb = jax.random.split(key, 3)
        bound = 1.0 / jnp.sqrt(jnp.float32(in_size))
        w = jax.random.uniform(
            kw, (out_size, in_size), jnp.float32, minval=-bound, maxval=bound)
        b = jax.random.uniform(
            kb, (out_size,), jnp.float32, minval=-bound, maxval=bound)
        params.append((w, b))
    return params


def mlp_reference(x, params):
    """Pure-JAX reference matching PyTorch semantics (f32)."""
    h = x
    n = len(params)
    for i, (w, b) in enumerate(params):
        h = h @ w.T + b
        if i < n - 1:
            h = jnp.maximum(h, 0.0)
    return h


if __name__ == "__main__":
    # RL balancer MLP: state dim 4 -> 32 -> 32 -> 2 actions.
    sizes = [4, 32, 32, 2]

    key = jax.random.PRNGKey(0)
    key, kx = jax.random.split(key)
    params = init_mlp_params(key, sizes)

    # One-time packing, outside the hot path.
    prep_f32 = prepare_params(params, compute_dtype=jnp.float32)   # exactness check
    prep_bf16 = prepare_params(params)                             # default hot path (bf16)

    # 1) Small RL-style batch -> no-grid, fully VMEM-resident path.
    batch_small = 8
    x_small = jax.random.normal(kx, (batch_small, sizes[0]), jnp.float32)
    ref_small = mlp_reference(x_small, params)

    out_f32 = jax.block_until_ready(mlp_forward(x_small, prep_f32))
    assert out_f32.shape == (batch_small, sizes[-1])
    assert jnp.allclose(out_f32, ref_small, atol=1e-5, rtol=1e-5), (
        f"f32 small-batch mismatch: max err {jnp.max(jnp.abs(out_f32 - ref_small))}")

    out_small = jax.block_until_ready(mlp_forward(x_small, prep_bf16))
    assert out_small.shape == (batch_small, sizes[-1])
    assert jnp.allclose(out_small, ref_small, atol=5e-2, rtol=5e-2), (
        f"bf16 small-batch mismatch: max err {jnp.max(jnp.abs(out_small - ref_small))}")

    # 2) Many environments / timesteps stacked -> batch-tiled "parallel" grid
    #    (bm = 512, grid of 2 -> shards across v7x's two TensorCores).
    key, kb = jax.random.split(key)
    batch_big = 1024
    x_big = jax.random.normal(kb, (batch_big, sizes[0]), jnp.float32)
    ref_big = mlp_reference(x_big, params)
    out_big = jax.block_until_ready(mlp_forward(x_big, prep_bf16))
    assert out_big.shape == (batch_big, sizes[-1])
    assert jnp.allclose(out_big, ref_big, atol=5e-2, rtol=5e-2), (
        f"bf16 big-batch mismatch: max err {jnp.max(jnp.abs(out_big - ref_big))}")

    print("KERNEL_OK")
</pallas_src>

<mosaic_0001>
module attributes {stable_mosaic.version = 11 : i64} {
  func.func @kernel(%arg0: memref<8x4xf32, #tpu.memory_space<vmem>>, %arg1: memref<264x128xf32, #tpu.memory_space<vmem>>, %arg2: memref<3x128xf32, #tpu.memory_space<vmem>>, %arg3: memref<8x128xf32, #tpu.memory_space<vmem>>) attributes {dimension_semantics = [], scalar_prefetch = 0 : i64, scratch_operands = 0 : i64, tpu.core_type = #tpu.core_type<tc>} {
    %c0 = arith.constant 0 : index
    %c0_0 = arith.constant 0 : index
    %0 = vector.load %arg0[%c0, %c0_0] : memref<8x4xf32, #tpu.memory_space<vmem>>, vector<8x4xf32>
    %c0_1 = arith.constant 0 : index
    %c0_2 = arith.constant 0 : index
    %1 = vector.load %arg1[%c0_1, %c0_2] : memref<264x128xf32, #tpu.memory_space<vmem>>, vector<4x128xf32>
    %c0_3 = arith.constant 0 : index
    %c0_4 = arith.constant 0 : index
    %2 = vector.load %arg2[%c0_3, %c0_4] : memref<3x128xf32, #tpu.memory_space<vmem>>, vector<1x128xf32>
    %cst = arith.constant dense<0.000000e+00> : vector<8x128xf32>
    %3 = tpu.matmul %0, %1, %cst {dimension_numbers = #tpu.dot_dimension_numbers<[1], [0], [0], [1], [0, 0, 1, 1], [], []>} : vector<8x4xf32>, vector<4x128xf32>, vector<8x128xf32> -> vector<8x128xf32>
    %4 = vector.broadcast %2 : vector<1x128xf32> to vector<8x128xf32>
    %5 = arith.addf %3, %4 : vector<8x128xf32>
    %cst_5 = arith.constant 0.000000e+00 : f32
    %6 = vector.broadcast %cst_5 : f32 to vector<8x128xf32>
    %7 = arith.maximumf %5, %6 : vector<8x128xf32>
    %c8 = arith.constant 8 : index
    %c0_6 = arith.constant 0 : index
    %8 = vector.load %arg1[%c8, %c0_6] : memref<264x128xf32, #tpu.memory_space<vmem>>, vector<128x128xf32>
    %c1 = arith.constant 1 : index
    %c0_7 = arith.constant 0 : index
    %9 = vector.load %arg2[%c1, %c0_7] : memref<3x128xf32, #tpu.memory_space<vmem>>, vector<1x128xf32>
    %cst_8 = arith.constant dense<0.000000e+00> : vector<8x128xf32>
    %10 = tpu.matmul %7, %8, %cst_8 {dimension_numbers = #tpu.dot_dimension_numbers<[1], [0], [0], [1], [0, 0, 1, 1], [], []>} : vector<8x128xf32>, vector<128x128xf32>, vector<8x128xf32> -> vector<8x128xf32>
    %11 = vector.broadcast %9 : vector<1x128xf32> to vector<8x128xf32>
    %12 = arith.addf %10, %11 : vector<8x128xf32>
    %cst_9 = arith.constant 0.000000e+00 : f32
    %13 = vector.broadcast %cst_9 : f32 to vector<8x128xf32>
    %14 = arith.maximumf %12, %13 : vector<8x128xf32>
    %c136 = arith.constant 136 : index
    %c0_10 = arith.constant 0 : index
    %15 = vector.load %arg1[%c136, %c0_10] : memref<264x128xf32, #tpu.memory_space<vmem>>, vector<128x128xf32>
    %c2 = arith.constant 2 : index
    %c0_11 = arith.constant 0 : index
    %16 = vector.load %arg2[%c2, %c0_11] : memref<3x128xf32, #tpu.memory_space<vmem>>, vector<1x128xf32>
    %cst_12 = arith.constant dense<0.000000e+00> : vector<8x128xf32>
    %17 = tpu.matmul %14, %15, %cst_12 {dimension_numbers = #tpu.dot_dimension_numbers<[1], [0], [0], [1], [0, 0, 1, 1], [], []>} : vector<8x128xf32>, vector<128x128xf32>, vector<8x128xf32> -> vector<8x128xf32>
    %18 = vector.broadcast %16 : vector<1x128xf32> to vector<8x128xf32>
    %19 = arith.addf %17, %18 : vector<8x128xf32>
    %c0_13 = arith.constant 0 : index
    %c0_14 = arith.constant 0 : index
    %20 = vector.load %arg3[%c0_13, %c0_14] : memref<8x128xf32, #tpu.memory_space<vmem>>, vector<8x128xf32>
    tpu.vector_store %arg3[%c0_13, %c0_14], %19 {strides = array<i32>} : memref<8x128xf32, #tpu.memory_space<vmem>>, vector<8x128xf32>,
    return
  }
}

</mosaic_0001>

<llo_original>
// kernel: _mlp_forward.1
$region0: #{_mlp_forward.1}
  #allocation0 [shape = 'u32[]', space=smem, size = 0x4, offset = 0x4, fixed_abs, tag = 'smem constant byte address 0x4 - core index']
  #allocation1 [shape = 'u32[144,128]{1,0:T(1,128)}', space=vmem, size = 0x12000, scoped, tag = 'internal scratch']
  %s0 = inlined_call_operand.vmem [shape: f32[8,4], index: 0, kind: input, shape index: {}]
  %s1 = inlined_call_operand.hbm [shape: f32[264,128], index: 1, kind: input, shape index: {}]
  %s2 = inlined_call_operand.vmem [shape: f32[3,128], index: 2, kind: input, shape index: {}]
  %s3 = inlined_call_operand.vmem [shape: f32[8,128], index: 3, kind: output, shape index: {}]
  %s4 = sld [smem:[#allocation0]]
  $region26: #{_mlp_forward.1} parent=0
    _
  %s6 = ssub.s32 1, %s4
  %s7 = scalar_select 0, %s6, %s4
  $region1: #{_mlp_forward.1} parent=0
    #allocation2 [shape = 'u8[135168]{0}', space=vmem, size = 0x21000, scoped, tag = 'input window, operand 1, single buffered']
    #allocation3 [shape = 's32[1]{0}', space=sflag, size = 0x4, scoped, tag = 'scoped memory for _mlp_forward.1']
    %8 = vsyncpa [#allocation3], 0
    // Predicated region
    $region2: #{_mlp_forward.1} parent=1 // pred_check
      _
    $region3: #{_mlp_forward.1} parent=1 // pred_check_branch
      %10 = sbr.rel (0) target = $region5
    $region4: #{_mlp_forward.1} parent=1 // pred_region
      _
    $region5: #{_mlp_forward.1} parent=1 // pred_fallthru
      _
    // Predicated region
    $region6: #{_mlp_forward.1} parent=1 // pred_check
      _
    $region7: #{_mlp_forward.1} parent=1 // pred_check_branch
      %12 = sbr.rel (0) target = $region9
    $region8: #{_mlp_forward.1} parent=1 // pred_region
      %s14 = ssub.s32 4224, 4224
      %15 = vsyncadd [#allocation3], %s14
      %s16 = sshll.u32 [#allocation2], 4
      %s17 = int_to_ptr.vmem [resolvable:$true] %s16
      %22 = dma.hbm_to_vmem [thread:$0]  %s1, 4224, %s17, [#allocation3], 128, 128, 8
    $region9: #{_mlp_forward.1} parent=1 // pred_fallthru
      _
    // Predicated region
    $region10: #{_mlp_forward.1} parent=1 // pred_check
      _
    $region11: #{_mlp_forward.1} parent=1 // pred_check_branch
      %24 = sbr.rel (0) target = $region13
    $region12: #{_mlp_forward.1} parent=1 // pred_region
      _
    $region13: #{_mlp_forward.1} parent=1 // pred_fallthru
      _
    // Predicated region
    $region14: #{_mlp_forward.1} parent=1 // pred_check
      _
    $region15: #{_mlp_forward.1} parent=1 // pred_check_branch
      %26 = sbr.rel (0) target = $region17
    $region16: #{_mlp_forward.1} parent=1 // pred_region
      %27 = dma.done [#allocation3], 4224
    $region17: #{_mlp_forward.1} parent=1 // pred_fallthru
      _
    %v28 = vld [vmem:[%s0] sm:$0xff]
    %v29 = vld [vmem:[#allocation2] sm:$0xf]
    %v30 = vld [vmem:[%s2] sm:$0x1]
    %v31 = vlaneseq
    %v32 = vshrl.u32 %v31, 7
    %v33 = vsub.s32 0, %v32
    %v34 = vrot.slane %v30, %v33
    %vm35 = vcmask 31744
    %v37 = vsel %vm35, %v28, 0
    %vm39 = vcmask 1043456
    %v41 = vsel %vm39, %v29, 0
    %43 = vmatprep.subr.mxu0 0.0
    %44 = vmatpush1.msra.mxu0 0.0
    %45 = vmatprep.subr.mxu0 0.0
    %46 = vmatpush1.msra.mxu0 0.0
    %47 = vmatprep.subr.mxu0 0.0
    %48 = vmatpush1.msra.mxu0 0.0
    %49 = vmatprep.subr.mxu0 0.0
    %50 = vmatpush1.msra.mxu0 0.0
    %51 = vmatprep.subr.mxu0 0.0
    %52 = vmatpush1.msra.mxu0 0.0
    %53 = vmatprep.subr.mxu0 0.0
    %54 = vmatpush1.msra.mxu0 0.0
    %55 = vmatprep.subr.mxu0 0.0
    %56 = vmatpush1.msra.mxu0 0.0
    %57 = vmatprep.subr.mxu0 0.0
    %58 = vmatpush1.msra.mxu0 0.0
    %59 = vmatprep.subr.mxu0 0.0
    %60 = vmatpush1.msra.mxu0 0.0
    %61 = vmatprep.subr.mxu0 0.0
    %62 = vmatpush1.msra.mxu0 0.0
    %63 = vmatprep.subr.mxu0 0.0
    %64 = vmatpush1.msra.mxu0 0.0
    %65 = vmatprep.subr.mxu0 0.0
    %66 = vmatpush1.msra.mxu0 0.0
    %67 = vmatprep.subr.mxu0 0.0
    %68 = vmatpush1.msra.mxu0 0.0
    %69 = vmatprep.subr.mxu0 0.0
    %70 = vmatpush1.msra.mxu0 0.0
    %71 = vmatprep.subr.mxu0 0.0
    %72 = vmatpush1.msra.mxu0 0.0
    %73 = vmatprep.subr.mxu0 0.0
    %74 = vmatpush1.msra.mxu0 %v41
    %75 = vmatprep.subr.mxu0 0.0
    %76 = vmatpush2.msra.mxu0 0.0
    %77 = vmatprep.subr.mxu0 0.0
    %78 = vmatpush2.msra.mxu0 0.0
    %79 = vmatprep.subr.mxu0 0.0
    %80 = vmatpush2.msra.mxu0 0.0
    %81 = vmatprep.subr.mxu0 0.0
    %82 = vmatpush2.msra.mxu0 0.0
    %83 = vmatprep.subr.mxu0 0.0
    %84 = vmatpush2.msra.mxu0 0.0
    %85 = vmatprep.subr.mxu0 0.0
    %86 = vmatpush2.msra.mxu0 0.0
    %87 = vmatprep.subr.mxu0 0.0
    %88 = vmatpush2.msra.mxu0 0.0
    %89 = vmatprep.subr.mxu0 0.0
    %90 = vmatpush2.msra.mxu0 0.0
    %91 = vmatprep.subr.mxu0 0.0
    %92 = vmatpush2.msra.mxu0 0.0
    %93 = vmatprep.subr.mxu0 0.0
    %94 = vmatpush2.msra.mxu0 0.0
    %95 = vmatprep.subr.mxu0 0.0
    %96 = vmatpush2.msra.mxu0 0.0
    %97 = vmatprep.subr.mxu0 0.0
    %98 = vmatpush2.msra.mxu0 0.0
    %99 = vmatprep.subr.mxu0 0.0
    %100 = vmatpush2.msra.mxu0 0.0
    %101 = vmatprep.subr.mxu0 0.0
    %102 = vmatpush2.msra.mxu0 0.0
    %103 = vmatprep.subr.mxu0 0.0
    %104 = vmatpush2.msra.mxu0 0.0
    %105 = vmatprep.subr.mxu0 0.0
    %106 = vmatpush2.msra.mxu0 0.0
    %107 = vmatprep.mubr.f32.mxu0 0.0
    %108 = vmatmul.mubr.f32.gmra.mxu0 %v37
    %v109 = vpop.f32.mrf.mxu0
    %v110 = vadd.f32 %v34, %v109
    %v111 = vpop.f32.mrf.mxu0
    %112 = vdwg.mxu0
    %v113 = vmax.f32 %v110, 0.0
    %v114 = vld [vmem:[#allocation2 + $0x8] sm:$0xff]
    %v115 = vld [vmem:[#allocation2 + $0x10] sm:$0xff]
    %v116 = vld [vmem:[#allocation2 + $0x18] sm:$0xff]
    %v117 = vld [vmem:[#allocation2 + $0x20] sm:$0xff]
    %v118 = vld [vmem:[#allocation2 + $0x28] sm:$0xff]
    %v119 = vld [vmem:[#allocation2 + $0x30] sm:$0xff]
    %v120 = vld [vmem:[#allocation2 + $0x38] sm:$0xff]
    %v121 = vld [vmem:[#allocation2 + $0x40] sm:$0xff]
    %v122 = vld [vmem:[#allocation2 + $0x48] sm:$0xff]
    %v123 = vld [vmem:[#allocation2 + $0x50] sm:$0xff]
    %v124 = vld [vmem:[#allocation2 + $0x58] sm:$0xff]
    %v125 = vld [vmem:[#allocation2 + $0x60] sm:$0xff]
    %v126 = vld [vmem:[#allocation2 + $0x68] sm:$0xff]
    %v127 = vld [vmem:[#allocation2 + $0x70] sm:$0xff]
    %v128 = vld [vmem:[#allocation2 + $0x78] sm:$0xff]
    %v129 = vld [vmem:[#allocation2 + $0x80] sm:$0xff]
    %v130 = vld [vmem:[%s2 + $0x1] sm:$0x1]
    %v131 = vlaneseq
    %v132 = vshrl.u32 %v131, 7
    %v133 = vsub.s32 0, %v132
    %v134 = vrot.slane %v130, %v133
    %135 = vmatprep.subr.mxu0 0.0
    %136 = vmatpush1.msra.mxu0 %v129
    %137 = vmatprep.subr.mxu0 0.0
    %138 = vmatpush1.msra.mxu0 %v128
    %139 = vmatprep.subr.mxu0 0.0
    %140 = vmatpush1.msra.mxu0 %v127
    %141 = vmatprep.subr.mxu0 0.0
    %142 = vmatpush1.msra.mxu0 %v126
    %143 = vmatprep.subr.mxu0 0.0
    %144 = vmatpush1.msra.mxu0 %v125
    %145 = vmatprep.subr.mxu0 0.0
    %146 = vmatpush1.msra.mxu0 %v124
    %147 = vmatprep.subr.mxu0 0.0
    %148 = vmatpush1.msra.mxu0 %v123
    %149 = vmatprep.subr.mxu0 0.0
    %150 = vmatpush1.msra.mxu0 %v122
    %151 = vmatprep.subr.mxu0 0.0
    %152 = vmatpush1.msra.mxu0 %v121
    %153 = vmatprep.subr.mxu0 0.0
    %154 = vmatpush1.msra.mxu0 %v120
    %155 = vmatprep.subr.mxu0 0.0
    %156 = vmatpush1.msra.mxu0 %v119
    %157 = vmatprep.subr.mxu0 0.0
    %158 = vmatpush1.msra.mxu0 %v118
    %159 = vmatprep.subr.mxu0 0.0
    %160 = vmatpush1.msra.mxu0 %v117
    %161 = vmatprep.subr.mxu0 0.0
    %162 = vmatpush1.msra.mxu0 %v116
    %163 = vmatprep.subr.mxu0 0.0
    %164 = vmatpush1.msra.mxu0 %v115
    %165 = vmatprep.subr.mxu0 0.0
    %166 = vmatpush1.msra.mxu0 %v114
    %167 = vmatprep.subr.mxu0 0.0
    %168 = vmatpush2.msra.mxu0 0.0
    %169 = vmatprep.subr.mxu0 0.0
    %170 = vmatpush2.msra.mxu0 0.0
    %171 = vmatprep.subr.mxu0 0.0
    %172 = vmatpush2.msra.mxu0 0.0
    %173 = vmatprep.subr.mxu0 0.0
    %174 = vmatpush2.msra.mxu0 0.0
    %175 = vmatprep.subr.mxu0 0.0
    %176 = vmatpush2.msra.mxu0 0.0
    %177 = vmatprep.subr.mxu0 0.0
    %178 = vmatpush2.msra.mxu0 0.0
    %179 = vmatprep.subr.mxu0 0.0
    %180 = vmatpush2.msra.mxu0 0.0
    %181 = vmatprep.subr.mxu0 0.0
    %182 = vmatpush2.msra.mxu0 0.0
    %183 = vmatprep.subr.mxu0 0.0
    %184 = vmatpush2.msra.mxu0 0.0
    %185 = vmatprep.subr.mxu0 0.0
    %186 = vmatpush2.msra.mxu0 0.0
    %187 = vmatprep.subr.mxu0 0.0
    %188 = vmatpush2.msra.mxu0 0.0
    %189 = vmatprep.subr.mxu0 0.0
    %190 = vmatpush2.msra.mxu0 0.0
    %191 = vmatprep.subr.mxu0 0.0
    %192 = vmatpush2.msra.mxu0 0.0
    %193 = vmatprep.subr.mxu0 0.0
    %194 = vmatpush2.msra.mxu0 0.0
    %195 = vmatprep.subr.mxu0 0.0
    %196 = vmatpush2.msra.mxu0 0.0
    %197 = vmatprep.subr.mxu0 0.0
    %198 = vmatpush2.msra.mxu0 0.0
    %199 = vmatprep.mubr.f32.mxu0 0.0
    %200 = vmatmul.mubr.f32.gmra.mxu0 %v113
    %v201 = vpop.f32.mrf.mxu0
    %v202 = vadd.f32 %v134, %v201
    %v203 = vpop.f32.mrf.mxu0
    %204 = vdwg.mxu0
    %v205 = vmax.f32 %v202, 0.0
    %v206 = vld [vmem:[#allocation2 + $0x88] sm:$0xff]
    %v207 = vld [vmem:[#allocation2 + $0x90] sm:$0xff]
    %v208 = vld [vmem:[#allocation2 + $0x98] sm:$0xff]
    %v209 = vld [vmem:[#allocation2 + $0xa0] sm:$0xff]
    %v210 = vld [vmem:[#allocation2 + $0xa8] sm:$0xff]
    %v211 = vld [vmem:[#allocation2 + $0xb0] sm:$0xff]
    %v212 = vld [vmem:[#allocation2 + $0xb8] sm:$0xff]
    %v213 = vld [vmem:[#allocation2 + $0xc0] sm:$0xff]
    %v214 = vld [vmem:[#allocation2 + $0xc8] sm:$0xff]
    %v215 = vld [vmem:[#allocation2 + $0xd0] sm:$0xff]
    %v216 = vld [vmem:[#allocation2 + $0xd8] sm:$0xff]
    %v217 = vld [vmem:[#allocation2 + $0xe0] sm:$0xff]
    %v218 = vld [vmem:[#allocation2 + $0xe8] sm:$0xff]
    %v219 = vld [vmem:[#allocation2 + $0xf0] sm:$0xff]
    %v220 = vld [vmem:[#allocation2 + $0xf8] sm:$0xff]
    %v221 = vld [vmem:[#allocation2 + $0x100] sm:$0xff]
    %v222 = vld [vmem:[%s2 + $0x2] sm:$0x1]
    %v223 = vlaneseq
    %v224 = vshrl.u32 %v223, 7
    %v225 = vsub.s32 0, %v224
    %v226 = vrot.slane %v222, %v225
    %227 = vmatprep.subr.mxu0 0.0
    %228 = vmatpush1.msra.mxu0 %v221
    %229 = vmatprep.subr.mxu0 0.0
    %230 = vmatpush1.msra.mxu0 %v220
    %231 = vmatprep.subr.mxu0 0.0
    %232 = vmatpush1.msra.mxu0 %v219
    %233 = vmatprep.subr.mxu0 0.0
    %234 = vmatpush1.msra.mxu0 %v218
    %235 = vmatprep.subr.mxu0 0.0
    %236 = vmatpush1.msra.mxu0 %v217
    %237 = vmatprep.subr.mxu0 0.0
    %238 = vmatpush1.msra.mxu0 %v216
    %239 = vmatprep.subr.mxu0 0.0
    %240 = vmatpush1.msra.mxu0 %v215
    %241 = vmatprep.subr.mxu0 0.0
    %242 = vmatpush1.msra.mxu0 %v214
    %243 = vmatprep.subr.mxu0 0.0
    %244 = vmatpush1.msra.mxu0 %v213
    %245 = vmatprep.subr.mxu0 0.0
    %246 = vmatpush1.msra.mxu0 %v212
    %247 = vmatprep.subr.mxu0 0.0
    %248 = vmatpush1.msra.mxu0 %v211
    %249 = vmatprep.subr.mxu0 0.0
    %250 = vmatpush1.msra.mxu0 %v210
    %251 = vmatprep.subr.mxu0 0.0
    %252 = vmatpush1.msra.mxu0 %v209
    %253 = vmatprep.subr.mxu0 0.0
    %254 = vmatpush1.msra.mxu0 %v208
    %255 = vmatprep.subr.mxu0 0.0
    %256 = vmatpush1.msra.mxu0 %v207
    %257 = vmatprep.subr.mxu0 0.0
    %258 = vmatpush1.msra.mxu0 %v206
    %259 = vmatprep.subr.mxu0 0.0
    %260 = vmatpush2.msra.mxu0 0.0
    %261 = vmatprep.subr.mxu0 0.0
    %262 = vmatpush2.msra.mxu0 0.0
    %263 = vmatprep.subr.mxu0 0.0
    %264 = vmatpush2.msra.mxu0 0.0
    %265 = vmatprep.subr.mxu0 0.0
    %266 = vmatpush2.msra.mxu0 0.0
    %267 = vmatprep.subr.mxu0 0.0
    %268 = vmatpush2.msra.mxu0 0.0
    %269 = vmatprep.subr.mxu0 0.0
    %270 = vmatpush2.msra.mxu0 0.0
    %271 = vmatprep.subr.mxu0 0.0
    %272 = vmatpush2.msra.mxu0 0.0
    %273 = vmatprep.subr.mxu0 0.0
    %274 = vmatpush2.msra.mxu0 0.0
    %275 = vmatprep.subr.mxu0 0.0
    %276 = vmatpush2.msra.mxu0 0.0
    %277 = vmatprep.subr.mxu0 0.0
    %278 = vmatpush2.msra.mxu0 0.0
    %279 = vmatprep.subr.mxu0 0.0
    %280 = vmatpush2.msra.mxu0 0.0
    %281 = vmatprep.subr.mxu0 0.0
    %282 = vmatpush2.msra.mxu0 0.0
    %283 = vmatprep.subr.mxu0 0.0
    %284 = vmatpush2.msra.mxu0 0.0
    %285 = vmatprep.subr.mxu0 0.0
    %286 = vmatpush2.msra.mxu0 0.0
    %287 = vmatprep.subr.mxu0 0.0
    %288 = vmatpush2.msra.mxu0 0.0
    %289 = vmatprep.subr.mxu0 0.0
    %290 = vmatpush2.msra.mxu0 0.0
    %291 = vmatprep.mubr.f32.mxu0 0.0
    %292 = vmatmul.mubr.f32.gmra.mxu0 %v205
    %v293 = vpop.f32.mrf.mxu0
    %v294 = vadd.f32 %v226, %v293
    %v295 = vpop.f32.mrf.mxu0
    %296 = vdwg.mxu0
    %297 = vst [vmem:[%s3] sm:$0xff] %v294
    // Predicated region
    $region18: #{_mlp_forward.1} parent=1 // pred_check
      _
    $region19: #{_mlp_forward.1} parent=1 // pred_check_branch
      %299 = sbr.rel (0) target = $region21
    $region20: #{_mlp_forward.1} parent=1 // pred_region
      _
    $region21: #{_mlp_forward.1} parent=1 // pred_fallthru
      _
    // Predicated region
    $region22: #{_mlp_forward.1} parent=1 // pred_check
      _
    $region23: #{_mlp_forward.1} parent=1 // pred_check_branch
      %301 = sbr.rel (0) target = $region25
    $region24: #{_mlp_forward.1} parent=1 // pred_region
      _
    $region25: #{_mlp_forward.1} parent=1 // pred_fallthru
      _
    %302 = vsyncpa [#allocation3], 1

</llo_original>
